<compile_context>
chip_gen: v7x
topology: tpu7x:2x2x1
jax: 0.10.0
libtpu: 0.0.40
codegen_flags: <defaults>
</compile_context>

<pallas_src>
import jax
import jax.numpy as jnp
from jax.experimental import pallas as pl
from jax.experimental.pallas import tpu as pltpu


def _projection_kernel(x_ref, w1_ref, w2_ref, o_ref, acc_ref):
    """One (batch-tile, hidden-tile) grid step.

    grid = (batch tiles ["parallel"], hidden tiles ["arbitrary" reduction]).
    """
    k = pl.program_id(1)

    @pl.when(k == 0)
    def _():
        acc_ref[...] = jnp.zeros_like(acc_ref)

    # hidden_k = relu(x @ W1[:, k-tile])   (bf16 operands, fp32 MXU accumulation)
    h = jnp.dot(x_ref[...], w1_ref[...], preferred_element_type=jnp.float32)
    h = jnp.maximum(h, 0.0)
    # acc += hidden_k @ W2[k-tile, :]
    acc_ref[...] += jnp.dot(h.astype(w2_ref.dtype), w2_ref[...],
                            preferred_element_type=jnp.float32)

    @pl.when(k == pl.num_programs(1) - 1)
    def _():
        o_ref[...] = acc_ref[...].astype(o_ref.dtype)


def _round_up(v, m):
    return ((v + m - 1) // m) * m


def projection_forward(x, w1, w2, *, tile_b=512, compute_dtype=jnp.bfloat16,
                       out_dtype=None):
    """x: (B, dim), w1: (dim, hidden), w2: (hidden, proj) -> (B, proj).

    Weights are stored pre-transposed relative to PyTorch's (out, in) layout so
    the kernel computes plain row-major matmuls on the MXU. Pass
    out_dtype=jnp.bfloat16 if the consumer tolerates a bf16 output (halves the
    out-tile VMEM and HBM writeback).
    """
    B, dim = x.shape
    dim_w, hidden = w1.shape
    hidden_w, proj = w2.shape
    assert dim == dim_w and hidden == hidden_w
    out_dtype = x.dtype if out_dtype is None else jnp.dtype(out_dtype)

    itemsize_c = jnp.dtype(compute_dtype).itemsize
    itemsize_o = jnp.dtype(out_dtype).itemsize

    # --- bf16 MXU operands (fp32 accumulation happens inside the kernel) ---
    xc = x.astype(compute_dtype)
    w1c = w1.astype(compute_dtype)
    w2c = w2.astype(compute_dtype)

    # --- lane-dense padding targets (exact: padded values are zero) ---
    proj_p = _round_up(proj, 128)
    hidden_p = _round_up(hidden, 128)

    # --- batch tiling: 16-row granule (bf16 packs 16 sublanes per vreg),
    #     minimal padding waste, >=2 grid steps for megacore on large batches ---
    Bp16 = _round_up(max(B, 1), 16)
    n_b = pl.cdiv(Bp16, tile_b)
    if Bp16 >= 512:
        n_b = max(n_b, 2)                 # split across v7x's two TensorCores
    tb = _round_up(pl.cdiv(Bp16, n_b), 16)
    Bp = tb * n_b
    if Bp != B:
        xc = jnp.pad(xc, ((0, Bp - B), (0, 0)))

    # --- generation-aware VMEM budget ---
    try:
        vmem_cap = int(pltpu.get_tpu_info().vmem_capacity_bytes)
    except Exception:
        vmem_cap = 64 * 1024 * 1024       # conservative: v7x per-core VMEM
    budget = int(vmem_cap * 0.6)

    def footprint(tk, n_k):
        w_buf = 1 if n_k == 1 else 2      # Buffered(1) weights when resident
        return (2 * tb * dim * itemsize_c            # x tiles (double-buffered)
                + w_buf * dim * tk * itemsize_c      # w1 tile(s)
                + w_buf * tk * proj_p * itemsize_c   # w2 tile(s)
                + 2 * tb * proj_p * itemsize_o       # out tiles (double-buffered)
                + tb * proj_p * 4                    # fp32 accumulator scratch
                + tb * tk * 4)                       # fp32 hidden intermediate

    # --- hidden (K) tiling: keep the weights resident when they fit the
    #     budget; otherwise stream hidden tiles over a reduction axis ---
    max_nk = max(hidden_p // 128, 1)
    n_k, tk = 1, hidden_p
    for cand in range(1, max_nk + 1):
        n_k = cand
        tk = _round_up(pl.cdiv(hidden_p, cand), 128)
        if footprint(tk, cand) <= budget:
            break
    hidden_pad = tk * n_k

    pad_h = hidden_pad - hidden
    pad_p = proj_p - proj
    if pad_h:
        w1c = jnp.pad(w1c, ((0, 0), (0, pad_h)))
    if pad_h or pad_p:
        w2c = jnp.pad(w2c, ((0, pad_h), (0, pad_p)))

    fp_bytes = footprint(tk, n_k)
    vmem_limit = int(min(max(int(fp_bytes * 1.4), 32 * 1024 * 1024),
                         int(vmem_cap * 0.75)))

    # --- cost hint for XLA's scheduler around the custom call ---
    weight_reads = 1 if n_k == 1 else n_b     # K-tiled weights re-stream per batch tile
    flops = 2 * Bp * (dim * hidden_pad + hidden_pad * proj_p)
    bytes_accessed = (Bp * dim * itemsize_c
                      + weight_reads * (dim * hidden_pad
                                        + hidden_pad * proj_p) * itemsize_c
                      + Bp * proj_p * itemsize_o)
    cost = pl.CostEstimate(flops=flops, transcendentals=0,
                           bytes_accessed=bytes_accessed)

    x_spec = pl.BlockSpec((tb, dim), lambda i, k: (i, 0))
    out_spec = pl.BlockSpec((tb, proj_p), lambda i, k: (i, 0))

    def build(weight_specs):
        return pl.pallas_call(
            _projection_kernel,
            out_shape=jax.ShapeDtypeStruct((Bp, proj_p), out_dtype),
            grid_spec=pltpu.PrefetchScalarGridSpec(
                num_scalar_prefetch=0,
                grid=(n_b, n_k),
                in_specs=[x_spec] + list(weight_specs),
                out_specs=out_spec,
                scratch_shapes=[pltpu.VMEM((tb, proj_p), jnp.float32)],
            ),
            compiler_params=pltpu.CompilerParams(
                dimension_semantics=("parallel", "arbitrary"),
                vmem_limit_bytes=vmem_limit,
            ),
            cost_estimate=cost,
        )

    if n_k == 1:
        # Weight blocks are constant across the grid -> single-buffer them
        # (double-buffering a constant block buys nothing and doubles VMEM).
        resident_specs = (
            pl.BlockSpec((dim, tk), lambda i, k: (0, 0),
                         pipeline_mode=pl.Buffered(1)),
            pl.BlockSpec((tk, proj_p), lambda i, k: (0, 0),
                         pipeline_mode=pl.Buffered(1)),
        )
        fallback_specs = (
            pl.BlockSpec((dim, tk), lambda i, k: (0, 0)),
            pl.BlockSpec((tk, proj_p), lambda i, k: (0, 0)),
        )
        try:
            out_padded = build(resident_specs)(xc, w1c, w2c)
        except Exception:
            # Compatibility fallback if this jax build rejects Buffered(1).
            out_padded = build(fallback_specs)(xc, w1c, w2c)
    else:
        streamed_specs = (
            pl.BlockSpec((dim, tk), lambda i, k: (0, k)),
            pl.BlockSpec((tk, proj_p), lambda i, k: (k, 0)),
        )
        out_padded = build(streamed_specs)(xc, w1c, w2c)

    # strip batch / lane padding
    return out_padded[:B, :proj]


if __name__ == "__main__":
    # Small shapes consistent with Projection(dim=inplanes,
    # projection_size=inplanes//4, hidden_size=inplanes//2).
    B, dim = 16, 64
    hidden_size, projection_size = dim // 2, dim // 4

    key = jax.random.PRNGKey(0)
    kx, k1, k2 = jax.random.split(key, 3)

    x = jax.random.normal(kx, (B, dim), dtype=jnp.float32)
    # PyTorch Linear weights are (out, in); we store them transposed (in, out).
    w1 = (jax.random.normal(k1, (dim, hidden_size), dtype=jnp.float32)
          * (1.0 / jnp.sqrt(dim)))
    w2 = (jax.random.normal(k2, (hidden_size, projection_size), dtype=jnp.float32)
          * (1.0 / jnp.sqrt(hidden_size)))

    out = projection_forward(x, w1, w2)
    jax.block_until_ready(out)
    assert out.shape == (B, projection_size)

    # Reference with the same bf16-operand / fp32-accumulation precision path.
    xb = x.astype(jnp.bfloat16)
    w1b = w1.astype(jnp.bfloat16)
    w2b = w2.astype(jnp.bfloat16)
    h_ref = jnp.maximum(
        jnp.dot(xb, w1b, preferred_element_type=jnp.float32), 0.0)
    ref = jnp.dot(h_ref.astype(jnp.bfloat16), w2b,
                  preferred_element_type=jnp.float32)
    assert jnp.allclose(out, ref, atol=2e-3, rtol=2e-3)

    print("KERNEL_OK")
</pallas_src>

<mosaic_0001>
module attributes {stable_mosaic.version = 11 : i64} {
  func.func @_projection_kernel(%arg0: i32, %arg1: i32, %arg2: memref<16x64xbf16, #tpu.memory_space<vmem>>, %arg3: memref<64x128xbf16, #tpu.memory_space<vmem>>, %arg4: memref<128x128xbf16, #tpu.memory_space<vmem>>, %arg5: memref<16x128xf32, #tpu.memory_space<vmem>>, %arg6: memref<16x128xf32, #tpu.memory_space<vmem>>) attributes {dimension_semantics = [#tpu.dimension_semantics<parallel>, #tpu.dimension_semantics<arbitrary>], iteration_bounds = array<i64: 1, 1>, scalar_prefetch = 0 : i64, scratch_operands = 1 : i64, tpu.core_type = #tpu.core_type<tc>, window_params = [{transform_indices = @transform_0, window_bounds = array<i64: 16, 64>}, {pipeline_mode = #tpu.pipeline_mode<synchronous>, transform_indices = @transform_1, window_bounds = array<i64: 64, 128>}, {pipeline_mode = #tpu.pipeline_mode<synchronous>, transform_indices = @transform_2, window_bounds = array<i64: 128, 128>}, {transform_indices = @transform_3, window_bounds = array<i64: 16, 128>}]} {
    %c0_i32 = arith.constant 0 : i32
    %0 = arith.cmpi eq, %arg1, %c0_i32 : i32
    %1 = arith.extui %0 : i1 to i32
    %c0_i32_0 = arith.constant 0 : i32
    %2 = arith.cmpi ne, %1, %c0_i32_0 : i32
    scf.if %2 {
      %cst_14 = arith.constant 0.000000e+00 : f32
      %17 = vector.broadcast %cst_14 : f32 to vector<16x128xf32>
      %c0_15 = arith.constant 0 : index
      %c0_16 = arith.constant 0 : index
      %18 = vector.load %arg6[%c0_15, %c0_16] : memref<16x128xf32, #tpu.memory_space<vmem>>, vector<16x128xf32>
      tpu.vector_store %arg6[%c0_15, %c0_16], %17 {strides = array<i32>} : memref<16x128xf32, #tpu.memory_space<vmem>>, vector<16x128xf32>,
    } else {
    }
    %c0 = arith.constant 0 : index
    %c0_1 = arith.constant 0 : index
    %3 = vector.load %arg2[%c0, %c0_1] : memref<16x64xbf16, #tpu.memory_space<vmem>>, vector<16x64xbf16>
    %c0_2 = arith.constant 0 : index
    %c0_3 = arith.constant 0 : index
    %4 = vector.load %arg3[%c0_2, %c0_3] : memref<64x128xbf16, #tpu.memory_space<vmem>>, vector<64x128xbf16>
    %cst = arith.constant dense<0.000000e+00> : vector<16x128xf32>
    %5 = tpu.matmul %3, %4, %cst {dimension_numbers = #tpu.dot_dimension_numbers<[1], [0], [0], [1], [0, 0, 1, 1], [], []>} : vector<16x64xbf16>, vector<64x128xbf16>, vector<16x128xf32> -> vector<16x128xf32>
    %cst_4 = arith.constant 0.000000e+00 : f32
    %6 = vector.broadcast %cst_4 : f32 to vector<16x128xf32>
    %7 = arith.maximumf %5, %6 : vector<16x128xf32>
    %c0_5 = arith.constant 0 : index
    %c0_6 = arith.constant 0 : index
    %8 = vector.load %arg6[%c0_5, %c0_6] : memref<16x128xf32, #tpu.memory_space<vmem>>, vector<16x128xf32>
    %9 = arith.truncf %7 : vector<16x128xf32> to vector<16x128xbf16>
    %c0_7 = arith.constant 0 : index
    %c0_8 = arith.constant 0 : index
    %10 = vector.load %arg4[%c0_7, %c0_8] : memref<128x128xbf16, #tpu.memory_space<vmem>>, vector<128x128xbf16>
    %cst_9 = arith.constant dense<0.000000e+00> : vector<16x128xf32>
    %11 = tpu.matmul %9, %10, %cst_9 {dimension_numbers = #tpu.dot_dimension_numbers<[1], [0], [0], [1], [0, 0, 1, 1], [], []>} : vector<16x128xbf16>, vector<128x128xbf16>, vector<16x128xf32> -> vector<16x128xf32>
    %12 = arith.addf %8, %11 : vector<16x128xf32>
    %c0_10 = arith.constant 0 : index
    %c0_11 = arith.constant 0 : index
    %13 = vector.load %arg6[%c0_10, %c0_11] : memref<16x128xf32, #tpu.memory_space<vmem>>, vector<16x128xf32>
    tpu.vector_store %arg6[%c0_10, %c0_11], %12 {strides = array<i32>} : memref<16x128xf32, #tpu.memory_space<vmem>>, vector<16x128xf32>,
    %c0_i32_12 = arith.constant 0 : i32
    %14 = arith.cmpi eq, %arg1, %c0_i32_12 : i32
    %15 = arith.extui %14 : i1 to i32
    %c0_i32_13 = arith.constant 0 : i32
    %16 = arith.cmpi ne, %15, %c0_i32_13 : i32
    scf.if %16 {
      %c0_14 = arith.constant 0 : index
      %c0_15 = arith.constant 0 : index
      %17 = vector.load %arg6[%c0_14, %c0_15] : memref<16x128xf32, #tpu.memory_space<vmem>>, vector<16x128xf32>
      %c0_16 = arith.constant 0 : index
      %c0_17 = arith.constant 0 : index
      %18 = vector.load %arg5[%c0_16, %c0_17] : memref<16x128xf32, #tpu.memory_space<vmem>>, vector<16x128xf32>
      tpu.vector_store %arg5[%c0_16, %c0_17], %17 {strides = array<i32>} : memref<16x128xf32, #tpu.memory_space<vmem>>, vector<16x128xf32>,
    } else {
    }
    return
  }
  func.func @transform_0(%arg0: i32, %arg1: i32) -> (i32, i32) {
    %c0_i32 = arith.constant 0 : i32
    %c0_i32_0 = arith.constant 0 : i32
    return %arg0, %c0_i32 : i32, i32
  }
  func.func @transform_1(%arg0: i32, %arg1: i32) -> (i32, i32) {
    %c0_i32 = arith.constant 0 : i32
    %c0_i32_0 = arith.constant 0 : i32
    %c0_i32_1 = arith.constant 0 : i32
    return %c0_i32, %c0_i32_0 : i32, i32
  }
  func.func @transform_2(%arg0: i32, %arg1: i32) -> (i32, i32) {
    %c0_i32 = arith.constant 0 : i32
    %c0_i32_0 = arith.constant 0 : i32
    %c0_i32_1 = arith.constant 0 : i32
    return %c0_i32, %c0_i32_0 : i32, i32
  }
  func.func @transform_3(%arg0: i32, %arg1: i32) -> (i32, i32) {
    %c0_i32 = arith.constant 0 : i32
    %c0_i32_0 = arith.constant 0 : i32
    return %arg0, %c0_i32 : i32, i32
  }
}

module attributes {stable_mosaic.version = 11 : i64} {
  func.func @_projection_kernel(%arg0: i32, %arg1: i32, %arg2: memref<16x64xbf16, #tpu.memory_space<vmem>>, %arg3: memref<64x128xbf16, #tpu.memory_space<vmem>>, %arg4: memref<128x128xbf16, #tpu.memory_space<vmem>>, %arg5: memref<16x128xf32, #tpu.memory_space<vmem>>, %arg6: memref<16x128xf32, #tpu.memory_space<vmem>>) attributes {dimension_semantics = [#tpu.dimension_semantics<parallel>, #tpu.dimension_semantics<arbitrary>], iteration_bounds = array<i64: 1, 1>, scalar_prefetch = 0 : i64, scratch_operands = 1 : i64, tpu.core_type = #tpu.core_type<tc>, window_params = [{transform_indices = @transform_0, window_bounds = array<i64: 16, 64>}, {pipeline_mode = #tpu.pipeline_mode<synchronous>, transform_indices = @transform_1, window_bounds = array<i64: 64, 128>}, {pipeline_mode = #tpu.pipeline_mode<synchronous>, transform_indices = @transform_2, window_bounds = array<i64: 128, 128>}, {transform_indices = @transform_3, window_bounds = array<i64: 16, 128>}]} {
    %c0_i32 = arith.constant 0 : i32
    %0 = arith.cmpi eq, %arg1, %c0_i32 : i32
    %1 = arith.extui %0 : i1 to i32
    %c0_i32_0 = arith.constant 0 : i32
    %2 = arith.cmpi ne, %1, %c0_i32_0 : i32
    scf.if %2 {
      %cst_14 = arith.constant 0.000000e+00 : f32
      %17 = vector.broadcast %cst_14 : f32 to vector<16x128xf32>
      %c0_15 = arith.constant 0 : index
      %c0_16 = arith.constant 0 : index
      %18 = vector.load %arg6[%c0_15, %c0_16] : memref<16x128xf32, #tpu.memory_space<vmem>>, vector<16x128xf32>
      tpu.vector_store %arg6[%c0_15, %c0_16], %17 {strides = array<i32>} : memref<16x128xf32, #tpu.memory_space<vmem>>, vector<16x128xf32>,
    } else {
    }
    %c0 = arith.constant 0 : index
    %c0_1 = arith.constant 0 : index
    %3 = vector.load %arg2[%c0, %c0_1] : memref<16x64xbf16, #tpu.memory_space<vmem>>, vector<16x64xbf16>
    %c0_2 = arith.constant 0 : index
    %c0_3 = arith.constant 0 : index
    %4 = vector.load %arg3[%c0_2, %c0_3] : memref<64x128xbf16, #tpu.memory_space<vmem>>, vector<64x128xbf16>
    %cst = arith.constant dense<0.000000e+00> : vector<16x128xf32>
    %5 = tpu.matmul %3, %4, %cst {dimension_numbers = #tpu.dot_dimension_numbers<[1], [0], [0], [1], [0, 0, 1, 1], [], []>} : vector<16x64xbf16>, vector<64x128xbf16>, vector<16x128xf32> -> vector<16x128xf32>
    %cst_4 = arith.constant 0.000000e+00 : f32
    %6 = vector.broadcast %cst_4 : f32 to vector<16x128xf32>
    %7 = arith.maximumf %5, %6 : vector<16x128xf32>
    %c0_5 = arith.constant 0 : index
    %c0_6 = arith.constant 0 : index
    %8 = vector.load %arg6[%c0_5, %c0_6] : memref<16x128xf32, #tpu.memory_space<vmem>>, vector<16x128xf32>
    %9 = arith.truncf %7 : vector<16x128xf32> to vector<16x128xbf16>
    %c0_7 = arith.constant 0 : index
    %c0_8 = arith.constant 0 : index
    %10 = vector.load %arg4[%c0_7, %c0_8] : memref<128x128xbf16, #tpu.memory_space<vmem>>, vector<128x128xbf16>
    %cst_9 = arith.constant dense<0.000000e+00> : vector<16x128xf32>
    %11 = tpu.matmul %9, %10, %cst_9 {dimension_numbers = #tpu.dot_dimension_numbers<[1], [0], [0], [1], [0, 0, 1, 1], [], []>} : vector<16x128xbf16>, vector<128x128xbf16>, vector<16x128xf32> -> vector<16x128xf32>
    %12 = arith.addf %8, %11 : vector<16x128xf32>
    %c0_10 = arith.constant 0 : index
    %c0_11 = arith.constant 0 : index
    %13 = vector.load %arg6[%c0_10, %c0_11] : memref<16x128xf32, #tpu.memory_space<vmem>>, vector<16x128xf32>
    tpu.vector_store %arg6[%c0_10, %c0_11], %12 {strides = array<i32>} : memref<16x128xf32, #tpu.memory_space<vmem>>, vector<16x128xf32>,
    %c0_i32_12 = arith.constant 0 : i32
    %14 = arith.cmpi eq, %arg1, %c0_i32_12 : i32
    %15 = arith.extui %14 : i1 to i32
    %c0_i32_13 = arith.constant 0 : i32
    %16 = arith.cmpi ne, %15, %c0_i32_13 : i32
    scf.if %16 {
      %c0_14 = arith.constant 0 : index
      %c0_15 = arith.constant 0 : index
      %17 = vector.load %arg6[%c0_14, %c0_15] : memref<16x128xf32, #tpu.memory_space<vmem>>, vector<16x128xf32>
      %c0_16 = arith.constant 0 : index
      %c0_17 = arith.constant 0 : index
      %18 = vector.load %arg5[%c0_16, %c0_17] : memref<16x128xf32, #tpu.memory_space<vmem>>, vector<16x128xf32>
      tpu.vector_store %arg5[%c0_16, %c0_17], %17 {strides = array<i32>} : memref<16x128xf32, #tpu.memory_space<vmem>>, vector<16x128xf32>,
    } else {
    }
    return
  }
  func.func @transform_0(%arg0: i32, %arg1: i32) -> (i32, i32) {
    %c0_i32 = arith.constant 0 : i32
    %c0_i32_0 = arith.constant 0 : i32
    return %arg0, %c0_i32 : i32, i32
  }
  func.func @transform_1(%arg0: i32, %arg1: i32) -> (i32, i32) {
    %c0_i32 = arith.constant 0 : i32
    %c0_i32_0 = arith.constant 0 : i32
    %c0_i32_1 = arith.constant 0 : i32
    return %c0_i32, %c0_i32_0 : i32, i32
  }
  func.func @transform_2(%arg0: i32, %arg1: i32) -> (i32, i32) {
    %c0_i32 = arith.constant 0 : i32
    %c0_i32_0 = arith.constant 0 : i32
    %c0_i32_1 = arith.constant 0 : i32
    return %c0_i32, %c0_i32_0 : i32, i32
  }
  func.func @transform_3(%arg0: i32, %arg1: i32) -> (i32, i32) {
    %c0_i32 = arith.constant 0 : i32
    %c0_i32_0 = arith.constant 0 : i32
    return %arg0, %c0_i32 : i32, i32
  }
}

</mosaic_0001>

<llo_original>
// kernel: tpu_custom_call.1
$region0: #{tpu_custom_call.1}
  #allocation0 [shape = 'u32[]', space=smem, size = 0x4, offset = 0x4, fixed_abs, tag = 'smem constant byte address 0x4 - core index']
  #allocation1 [shape = 'u32[144,128]{1,0:T(1,128)}', space=vmem, size = 0x12000, scoped, tag = 'internal scratch']
  #allocation2 [shape = 'f32[16,128]{1,0:T(8,128)}', space=vmem, size = 0x2000, scoped, tag = 'scratch operand']
  %s0 = inlined_call_operand.hbm [shape: bf16[16,64], index: 0, kind: input, shape index: {}]
  %s1 = inlined_call_operand.hbm [shape: bf16[64,128], index: 1, kind: input, shape index: {}]
  %s2 = inlined_call_operand.hbm [shape: bf16[128,128], index: 2, kind: input, shape index: {}]
  %s3 = inlined_call_operand.hbm [shape: f32[16,128], index: 3, kind: output, shape index: {}]
  %s4 = sld [smem:[#allocation0]]
  $region42: #{tpu_custom_call.1} parent=0
    _
  %s6 = ssub.s32 1, %s4
  %s7 = scalar_select 0, %s6, %s4
  $region1: #{tpu_custom_call.1} parent=0
    #allocation3 [shape = 'u8[4096]{0}', space=vmem, size = 0x1000, scoped, tag = 'input window, operand 0, single buffered']
    #allocation4 [shape = 's32[1]{0}', space=sflag, size = 0x4, scoped, tag = 'scoped memory for tpu_custom_call.1']
    #allocation5 [shape = 's32[1]{0}', space=sflag, size = 0x4, scoped, tag = 'scoped memory for tpu_custom_call.1']
    #allocation6 [shape = 'u8[16384]{0}', space=vmem, size = 0x4000, scoped, tag = 'input window, operand 1, single buffered']
    #allocation7 [shape = 's32[1]{0}', space=sflag, size = 0x4, scoped, tag = 'scoped memory for tpu_custom_call.1']
    #allocation8 [shape = 'u8[32768]{0}', space=vmem, size = 0x8000, scoped, tag = 'input window, operand 2, single buffered']
    #allocation9 [shape = 'u8[8192]{0}', space=vmem, size = 0x2000, scoped, tag = 'output window, operand 0, single buffered']
    %8 = vsyncpa [#allocation4], 0
    %9 = vsyncpa [#allocation7], 0
    %10 = vsyncpa [#allocation5], 0
    // Predicated region
    $region2: #{tpu_custom_call.1} parent=1 // pred_check
      _
    $region3: #{tpu_custom_call.1} parent=1 // pred_check_branch
      %12 = sbr.rel (0) target = $region5
    $region4: #{tpu_custom_call.1} parent=1 // pred_region
      %s14 = ssub.s32 128, 128
      %15 = vsyncadd [#allocation4], %s14
      %s16 = sshll.u32 [#allocation3], 4
      %s17 = int_to_ptr.vmem [resolvable:$true] %s16
      %22 = dma.hbm_to_vmem [thread:$0]  %s0, 128, %s17, [#allocation4], 64, 64, 4
    $region5: #{tpu_custom_call.1} parent=1 // pred_fallthru
      _
    // Predicated region
    $region6: #{tpu_custom_call.1} parent=1 // pred_check
      _
    $region7: #{tpu_custom_call.1} parent=1 // pred_check_branch
      %24 = sbr.rel (0) target = $region9
    $region8: #{tpu_custom_call.1} parent=1 // pred_region
      %s26 = ssub.s32 512, 512
      %27 = vsyncadd [#allocation7], %s26
      %s28 = sshll.u32 [#allocation6], 4
      %s29 = int_to_ptr.vmem [resolvable:$true] %s28
      %34 = dma.hbm_to_vmem [thread:$0]  %s1, 512, %s29, [#allocation7], 64, 64, 4
    $region9: #{tpu_custom_call.1} parent=1 // pred_fallthru
      _
    // Predicated region
    $region10: #{tpu_custom_call.1} parent=1 // pred_check
      _
    $region11: #{tpu_custom_call.1} parent=1 // pred_check_branch
      %36 = sbr.rel (0) target = $region13
    $region12: #{tpu_custom_call.1} parent=1 // pred_region
      %s38 = ssub.s32 1024, 1024
      %39 = vsyncadd [#allocation7], %s38
      %s40 = sshll.u32 [#allocation8], 4
      %s41 = int_to_ptr.vmem [resolvable:$true] %s40
      %46 = dma.hbm_to_vmem [thread:$0]  %s2, 1024, %s41, [#allocation7], 64, 64, 4
    $region13: #{tpu_custom_call.1} parent=1 // pred_fallthru
      _
    // Predicated region
    $region14: #{tpu_custom_call.1} parent=1 // pred_check
      _
    $region15: #{tpu_custom_call.1} parent=1 // pred_check_branch
      %48 = sbr.rel (0) target = $region17
    $region16: #{tpu_custom_call.1} parent=1 // pred_region
      %49 = dma.done [#allocation4], 128
    $region17: #{tpu_custom_call.1} parent=1 // pred_fallthru
      _
    // Predicated region
    $region18: #{tpu_custom_call.1} parent=1 // pred_check
      _
    $region19: #{tpu_custom_call.1} parent=1 // pred_check_branch
      %51 = sbr.rel (0) target = $region21
    $region20: #{tpu_custom_call.1} parent=1 // pred_region
      %52 = dma.done [#allocation7], 512
    $region21: #{tpu_custom_call.1} parent=1 // pred_fallthru
      _
    // Predicated region
    $region22: #{tpu_custom_call.1} parent=1 // pred_check
      _
    $region23: #{tpu_custom_call.1} parent=1 // pred_check_branch
      %54 = sbr.rel (0) target = $region25
    $region24: #{tpu_custom_call.1} parent=1 // pred_region
      %55 = dma.done [#allocation7], 1024
    $region25: #{tpu_custom_call.1} parent=1 // pred_fallthru
      _
    %p57 = scmp.eq.s32.totalorder 0, 0
    // Predicated region
    $region26: #{tpu_custom_call.1} parent=1 // pred_check
      %p58 = pneg %p57
    $region27: #{tpu_custom_call.1} parent=1 // pred_check_branch
      %60 = sbr.rel (%p58) target = $region29
    $region28: #{tpu_custom_call.1} parent=1 // pred_region
      %61 = vst [vmem:[#allocation2] sm:$0xff] 0.0
      %62 = vst [vmem:[#allocation2 + $0x8] sm:$0xff] 0.0
    $region29: #{tpu_custom_call.1} parent=1 // pred_fallthru
      _
    %v63 = vld [vmem:[#allocation3] sm:$0xf]
    %v64 = vld [vmem:[#allocation3 + $0x4] sm:$0xf]
    %v65 = vld [vmem:[#allocation6] sm:$0xf]
    %v66 = vld [vmem:[#allocation6 + $0x4] sm:$0xf]
    %v67 = vld [vmem:[#allocation6 + $0x8] sm:$0xf]
    %v68 = vld [vmem:[#allocation6 + $0xc] sm:$0xf]
    %v69 = vld [vmem:[#allocation6 + $0x10] sm:$0xf]
    %v70 = vld [vmem:[#allocation6 + $0x14] sm:$0xf]
    %v71 = vld [vmem:[#allocation6 + $0x18] sm:$0xf]
    %v72 = vld [vmem:[#allocation6 + $0x1c] sm:$0xf]
    %v75 = vunpack.c.l.b16 %v63
    %v76 = vunpack.c.l.b16 %v64
    %v77 = vpack.c.b16 %v76, %v75
    %v86 = vunpack.c.l.b16 %v65
    %v87 = vunpack.c.l.b16 %v66
    %v88 = vunpack.c.l.b16 %v67
    %v89 = vunpack.c.l.b16 %v68
    %v90 = vunpack.c.l.b16 %v69
    %v91 = vunpack.c.l.b16 %v70
    %v92 = vunpack.c.l.b16 %v71
    %v93 = vunpack.c.l.b16 %v72
    %v94 = vpack.c.b16 %v87, %v86
    %v95 = vpack.c.b16 %v89, %v88
    %v96 = vpack.c.b16 %v91, %v90
    %v97 = vpack.c.b16 %v93, %v92
    %vm102 = vcmask 523264
    %v104 = vsel %vm102, %v77, 0
    %106 = vmatprep.subr.bf16.mxu0 0
    %107 = vmatpush1.bf16.msra.mxu0 %v94
    %108 = vmatprep.subr.bf16.mxu0 0
    %109 = vmatpush1.bf16.msra.mxu0 %v95
    %110 = vmatprep.subr.bf16.mxu0 0
    %111 = vmatpush1.bf16.msra.mxu0 %v96
    %112 = vmatprep.subr.bf16.mxu0 0
    %113 = vmatpush1.bf16.msra.mxu0 %v97
    %114 = vmatprep.subr.bf16.mxu0 0
    %115 = vmatpush1.bf16.msra.mxu0 0
    %116 = vmatprep.subr.bf16.mxu0 0
    %117 = vmatpush1.bf16.msra.mxu0 0
    %118 = vmatprep.subr.bf16.mxu0 0
    %119 = vmatpush1.bf16.msra.mxu0 0
    %120 = vmatprep.subr.bf16.mxu0 0
    %121 = vmatpush1.bf16.msra.mxu0 0
    %122 = vmatprep.subr.bf16.mxu0 0
    %123 = vmatpush1.bf16.msra.mxu0 0
    %124 = vmatprep.subr.bf16.mxu0 0
    %125 = vmatpush1.bf16.msra.mxu0 0
    %126 = vmatprep.subr.bf16.mxu0 0
    %127 = vmatpush1.bf16.msra.mxu0 0
    %128 = vmatprep.subr.bf16.mxu0 0
    %129 = vmatpush1.bf16.msra.mxu0 0
    %130 = vmatprep.subr.bf16.mxu0 0
    %131 = vmatpush1.bf16.msra.mxu0 0
    %132 = vmatprep.subr.bf16.mxu0 0
    %133 = vmatpush1.bf16.msra.mxu0 0
    %134 = vmatprep.subr.bf16.mxu0 0
    %135 = vmatpush1.bf16.msra.mxu0 0
    %136 = vmatprep.subr.bf16.mxu0 0
    %137 = vmatpush1.bf16.msra.mxu0 0
    %138 = vmatprep.mubr.bf16.mxu0 0
    %139 = vmatmul.mubr.bf16.gmra.mrb[0].mxu0 %v104
    %v140 = vpop.f32.mrb[0].mxu0
    %v141 = vadd.f32 0.0, %v140
    %v142 = vpop.f32.mrb[0].mxu0
    %v143 = vpop.f32.mrb[0].mxu0
    %v144 = vadd.f32 0.0, %v143
    %v145 = vpop.f32.mrb[0].mxu0
    %146 = vdwg.mxu0
    %v147 = vmax.f32 %v141, 0.0
    %v148 = vmax.f32 %v144, 0.0
    %v149 = vld [vmem:[#allocation2] sm:$0xff]
    %v150 = vld [vmem:[#allocation2 + $0x8] sm:$0xff]
    %v151 = vpack.c.bf16 %v148, %v147
    %v152 = vld [vmem:[#allocation8] sm:$0xf]
    %v153 = vld [vmem:[#allocation8 + $0x4] sm:$0xf]
    %v154 = vld [vmem:[#allocation8 + $0x8] sm:$0xf]
    %v155 = vld [vmem:[#allocation8 + $0xc] sm:$0xf]
    %v156 = vld [vmem:[#allocation8 + $0x10] sm:$0xf]
    %v157 = vld [vmem:[#allocation8 + $0x14] sm:$0xf]
    %v158 = vld [vmem:[#allocation8 + $0x18] sm:$0xf]
    %v159 = vld [vmem:[#allocation8 + $0x1c] sm:$0xf]
    %v160 = vld [vmem:[#allocation8 + $0x20] sm:$0xf]
    %v161 = vld [vmem:[#allocation8 + $0x24] sm:$0xf]
    %v162 = vld [vmem:[#allocation8 + $0x28] sm:$0xf]
    %v163 = vld [vmem:[#allocation8 + $0x2c] sm:$0xf]
    %v164 = vld [vmem:[#allocation8 + $0x30] sm:$0xf]
    %v165 = vld [vmem:[#allocation8 + $0x34] sm:$0xf]
    %v166 = vld [vmem:[#allocation8 + $0x38] sm:$0xf]
    %v167 = vld [vmem:[#allocation8 + $0x3c] sm:$0xf]
    %v184 = vunpack.c.l.b16 %v152
    %v185 = vunpack.c.l.b16 %v153
    %v186 = vunpack.c.l.b16 %v154
    %v187 = vunpack.c.l.b16 %v155
    %v188 = vunpack.c.l.b16 %v156
    %v189 = vunpack.c.l.b16 %v157
    %v190 = vunpack.c.l.b16 %v158
    %v191 = vunpack.c.l.b16 %v159
    %v192 = vunpack.c.l.b16 %v160
    %v193 = vunpack.c.l.b16 %v161
    %v194 = vunpack.c.l.b16 %v162
    %v195 = vunpack.c.l.b16 %v163
    %v196 = vunpack.c.l.b16 %v164
    %v197 = vunpack.c.l.b16 %v165
    %v198 = vunpack.c.l.b16 %v166
    %v199 = vunpack.c.l.b16 %v167
    %v200 = vpack.c.b16 %v185, %v184
    %v201 = vpack.c.b16 %v187, %v186
    %v202 = vpack.c.b16 %v189, %v188
    %v203 = vpack.c.b16 %v191, %v190
    %v204 = vpack.c.b16 %v193, %v192
    %v205 = vpack.c.b16 %v195, %v194
    %v206 = vpack.c.b16 %v197, %v196
    %v207 = vpack.c.b16 %v199, %v198
    %216 = vmatprep.subr.bf16.mxu0 0
    %217 = vmatpush1.bf16.msra.mxu0 %v200
    %218 = vmatprep.subr.bf16.mxu0 0
    %219 = vmatpush1.bf16.msra.mxu0 %v201
    %220 = vmatprep.subr.bf16.mxu0 0
    %221 = vmatpush1.bf16.msra.mxu0 %v202
    %222 = vmatprep.subr.bf16.mxu0 0
    %223 = vmatpush1.bf16.msra.mxu0 %v203
    %224 = vmatprep.subr.bf16.mxu0 0
    %225 = vmatpush1.bf16.msra.mxu0 %v204
    %226 = vmatprep.subr.bf16.mxu0 0
    %227 = vmatpush1.bf16.msra.mxu0 %v205
    %228 = vmatprep.subr.bf16.mxu0 0
    %229 = vmatpush1.bf16.msra.mxu0 %v206
    %230 = vmatprep.subr.bf16.mxu0 0
    %231 = vmatpush1.bf16.msra.mxu0 %v207
    %232 = vmatprep.subr.bf16.mxu0 0
    %233 = vmatpush1.bf16.msra.mxu0 0
    %234 = vmatprep.subr.bf16.mxu0 0
    %235 = vmatpush1.bf16.msra.mxu0 0
    %236 = vmatprep.subr.bf16.mxu0 0
    %237 = vmatpush1.bf16.msra.mxu0 0
    %238 = vmatprep.subr.bf16.mxu0 0
    %239 = vmatpush1.bf16.msra.mxu0 0
    %240 = vmatprep.subr.bf16.mxu0 0
    %241 = vmatpush1.bf16.msra.mxu0 0
    %242 = vmatprep.subr.bf16.mxu0 0
    %243 = vmatpush1.bf16.msra.mxu0 0
    %244 = vmatprep.subr.bf16.mxu0 0
    %245 = vmatpush1.bf16.msra.mxu0 0
    %246 = vmatprep.subr.bf16.mxu0 0
    %247 = vmatpush1.bf16.msra.mxu0 0
    %248 = vmatprep.mubr.bf16.mxu0 0
    %249 = vmatmul.mubr.bf16.gmra.mrb[0].mxu0 %v151
    %v250 = vpop.f32.mrb[0].mxu0
    %v251 = vadd.f32 0.0, %v250
    %v252 = vpop.f32.mrb[0].mxu0
    %v253 = vpop.f32.mrb[0].mxu0
    %v254 = vadd.f32 0.0, %v253
    %v255 = vpop.f32.mrb[0].mxu0
    %256 = vdwg.mxu0
    %v257 = vadd.f32 %v149, %v251
    %v258 = vadd.f32 %v150, %v254
    %259 = vst [vmem:[#allocation2] sm:$0xff] %v257
    %260 = vst [vmem:[#allocation2 + $0x8] sm:$0xff] %v258
    // Predicated region
    $region30: #{tpu_custom_call.1} parent=1 // pred_check
      %p261 = pneg %p57
    $region31: #{tpu_custom_call.1} parent=1 // pred_check_branch
      %263 = sbr.rel (%p261) target = $region33
    $region32: #{tpu_custom_call.1} parent=1 // pred_region
      %v264 = vld [vmem:[#allocation2] sm:$0xff]
      %v265 = vld [vmem:[#allocation2 + $0x8] sm:$0xff]
      %266 = vst [vmem:[#allocation9] sm:$0xff] %v264
      %267 = vst [vmem:[#allocation9 + $0x8] sm:$0xff] %v265
    $region33: #{tpu_custom_call.1} parent=1 // pred_fallthru
      _
    // Predicated region
    $region34: #{tpu_custom_call.1} parent=1 // pred_check
      _
    $region35: #{tpu_custom_call.1} parent=1 // pred_check_branch
      %269 = sbr.rel (0) target = $region37
    $region36: #{tpu_custom_call.1} parent=1 // pred_region
      %s271 = ssub.s32 256, 256
      %272 = vsyncadd [#allocation5], %s271
      %s273 = sshll.u32 [#allocation9], 4
      %s274 = int_to_ptr.vmem [resolvable:$true] %s273
      %279 = dma.vmem_to_hbm [thread:$0]  %s274, 256, %s3, [#allocation5], 128, 128, 8
    $region37: #{tpu_custom_call.1} parent=1 // pred_fallthru
      _
    // Predicated region
    $region38: #{tpu_custom_call.1} parent=1 // pred_check
      _
    $region39: #{tpu_custom_call.1} parent=1 // pred_check_branch
      %281 = sbr.rel (0) target = $region41
    $region40: #{tpu_custom_call.1} parent=1 // pred_region
      %282 = dma.done [#allocation5], 256
    $region41: #{tpu_custom_call.1} parent=1 // pred_fallthru
      _
    %283 = vsyncpa [#allocation4], 1
    %284 = vsyncpa [#allocation7], 1
    %285 = vsyncpa [#allocation5], 1

// kernel: tpu_custom_call.1
$region0: #{tpu_custom_call.1}
  #allocation0 [shape = 'u32[]', space=smem, size = 0x4, offset = 0x4, fixed_abs, tag = 'smem constant byte address 0x4 - core index']
  #allocation1 [shape = 'u32[144,128]{1,0:T(1,128)}', space=vmem, size = 0x12000, scoped, tag = 'internal scratch']
  #allocation2 [shape = 'f32[16,128]{1,0:T(8,128)}', space=vmem, size = 0x2000, scoped, tag = 'scratch operand']
  %s0 = inlined_call_operand.hbm [shape: bf16[16,64], index: 0, kind: input, shape index: {}]
  %s1 = inlined_call_operand.hbm [shape: bf16[64,128], index: 1, kind: input, shape index: {}]
  %s2 = inlined_call_operand.hbm [shape: bf16[128,128], index: 2, kind: input, shape index: {}]
  %s3 = inlined_call_operand.hbm [shape: f32[16,128], index: 3, kind: output, shape index: {}]
  %s4 = sld [smem:[#allocation0]]
  $region42: #{tpu_custom_call.1} parent=0
    _
  %s6 = ssub.s32 1, %s4
  %s7 = scalar_select 0, %s6, %s4
  $region1: #{tpu_custom_call.1} parent=0
    #allocation3 [shape = 'u8[4096]{0}', space=vmem, size = 0x1000, scoped, tag = 'input window, operand 0, single buffered']
    #allocation4 [shape = 's32[1]{0}', space=sflag, size = 0x4, scoped, tag = 'scoped memory for tpu_custom_call.1']
    #allocation5 [shape = 's32[1]{0}', space=sflag, size = 0x4, scoped, tag = 'scoped memory for tpu_custom_call.1']
    #allocation6 [shape = 'u8[16384]{0}', space=vmem, size = 0x4000, scoped, tag = 'input window, operand 1, single buffered']
    #allocation7 [shape = 's32[1]{0}', space=sflag, size = 0x4, scoped, tag = 'scoped memory for tpu_custom_call.1']
    #allocation8 [shape = 'u8[32768]{0}', space=vmem, size = 0x8000, scoped, tag = 'input window, operand 2, single buffered']
    #allocation9 [shape = 'u8[8192]{0}', space=vmem, size = 0x2000, scoped, tag = 'output window, operand 0, single buffered']
    %8 = vsyncpa [#allocation4], 0
    %9 = vsyncpa [#allocation7], 0
    %10 = vsyncpa [#allocation5], 0
    // Predicated region
    $region2: #{tpu_custom_call.1} parent=1 // pred_check
      _
    $region3: #{tpu_custom_call.1} parent=1 // pred_check_branch
      %12 = sbr.rel (0) target = $region5
    $region4: #{tpu_custom_call.1} parent=1 // pred_region
      %s14 = ssub.s32 128, 128
      %15 = vsyncadd [#allocation4], %s14
      %s16 = sshll.u32 [#allocation3], 4
      %s17 = int_to_ptr.vmem [resolvable:$true] %s16
      %22 = dma.hbm_to_vmem [thread:$0]  %s0, 128, %s17, [#allocation4], 64, 64, 4
    $region5: #{tpu_custom_call.1} parent=1 // pred_fallthru
      _
    // Predicated region
    $region6: #{tpu_custom_call.1} parent=1 // pred_check
      _
    $region7: #{tpu_custom_call.1} parent=1 // pred_check_branch
      %24 = sbr.rel (0) target = $region9
    $region8: #{tpu_custom_call.1} parent=1 // pred_region
      %s26 = ssub.s32 512, 512
      %27 = vsyncadd [#allocation7], %s26
      %s28 = sshll.u32 [#allocation6], 4
      %s29 = int_to_ptr.vmem [resolvable:$true] %s28
      %34 = dma.hbm_to_vmem [thread:$0]  %s1, 512, %s29, [#allocation7], 64, 64, 4
    $region9: #{tpu_custom_call.1} parent=1 // pred_fallthru
      _
    // Predicated region
    $region10: #{tpu_custom_call.1} parent=1 // pred_check
      _
    $region11: #{tpu_custom_call.1} parent=1 // pred_check_branch
      %36 = sbr.rel (0) target = $region13
    $region12: #{tpu_custom_call.1} parent=1 // pred_region
      %s38 = ssub.s32 1024, 1024
      %39 = vsyncadd [#allocation7], %s38
      %s40 = sshll.u32 [#allocation8], 4
      %s41 = int_to_ptr.vmem [resolvable:$true] %s40
      %46 = dma.hbm_to_vmem [thread:$0]  %s2, 1024, %s41, [#allocation7], 64, 64, 4
    $region13: #{tpu_custom_call.1} parent=1 // pred_fallthru
      _
    // Predicated region
    $region14: #{tpu_custom_call.1} parent=1 // pred_check
      _
    $region15: #{tpu_custom_call.1} parent=1 // pred_check_branch
      %48 = sbr.rel (0) target = $region17
    $region16: #{tpu_custom_call.1} parent=1 // pred_region
      %49 = dma.done [#allocation4], 128
    $region17: #{tpu_custom_call.1} parent=1 // pred_fallthru
      _
    // Predicated region
    $region18: #{tpu_custom_call.1} parent=1 // pred_check
      _
    $region19: #{tpu_custom_call.1} parent=1 // pred_check_branch
      %51 = sbr.rel (0) target = $region21
    $region20: #{tpu_custom_call.1} parent=1 // pred_region
      %52 = dma.done [#allocation7], 512
    $region21: #{tpu_custom_call.1} parent=1 // pred_fallthru
      _
    // Predicated region
    $region22: #{tpu_custom_call.1} parent=1 // pred_check
      _
    $region23: #{tpu_custom_call.1} parent=1 // pred_check_branch
      %54 = sbr.rel (0) target = $region25
    $region24: #{tpu_custom_call.1} parent=1 // pred_region
      %55 = dma.done [#allocation7], 1024
    $region25: #{tpu_custom_call.1} parent=1 // pred_fallthru
      _
    %p57 = scmp.eq.s32.totalorder 0, 0
    // Predicated region
    $region26: #{tpu_custom_call.1} parent=1 // pred_check
      %p58 = pneg %p57
    $region27: #{tpu_custom_call.1} parent=1 // pred_check_branch
      %60 = sbr.rel (%p58) target = $region29
    $region28: #{tpu_custom_call.1} parent=1 // pred_region
      %61 = vst [vmem:[#allocation2] sm:$0xff] 0.0
      %62 = vst [vmem:[#allocation2 + $0x8] sm:$0xff] 0.0
    $region29: #{tpu_custom_call.1} parent=1 // pred_fallthru
      _
    %v63 = vld [vmem:[#allocation3] sm:$0xf]
    %v64 = vld [vmem:[#allocation3 + $0x4] sm:$0xf]
    %v65 = vld [vmem:[#allocation6] sm:$0xf]
    %v66 = vld [vmem:[#allocation6 + $0x4] sm:$0xf]
    %v67 = vld [vmem:[#allocation6 + $0x8] sm:$0xf]
    %v68 = vld [vmem:[#allocation6 + $0xc] sm:$0xf]
    %v69 = vld [vmem:[#allocation6 + $0x10] sm:$0xf]
    %v70 = vld [vmem:[#allocation6 + $0x14] sm:$0xf]
    %v71 = vld [vmem:[#allocation6 + $0x18] sm:$0xf]
    %v72 = vld [vmem:[#allocation6 + $0x1c] sm:$0xf]
    %v75 = vunpack.c.l.b16 %v63
    %v76 = vunpack.c.l.b16 %v64
    %v77 = vpack.c.b16 %v76, %v75
    %v86 = vunpack.c.l.b16 %v65
    %v87 = vunpack.c.l.b16 %v66
    %v88 = vunpack.c.l.b16 %v67
    %v89 = vunpack.c.l.b16 %v68
    %v90 = vunpack.c.l.b16 %v69
    %v91 = vunpack.c.l.b16 %v70
    %v92 = vunpack.c.l.b16 %v71
    %v93 = vunpack.c.l.b16 %v72
    %v94 = vpack.c.b16 %v87, %v86
    %v95 = vpack.c.b16 %v89, %v88
    %v96 = vpack.c.b16 %v91, %v90
    %v97 = vpack.c.b16 %v93, %v92
    %vm102 = vcmask 523264
    %v104 = vsel %vm102, %v77, 0
    %106 = vmatprep.subr.bf16.mxu0 0
    %107 = vmatpush1.bf16.msra.mxu0 %v94
    %108 = vmatprep.subr.bf16.mxu0 0
    %109 = vmatpush1.bf16.msra.mxu0 %v95
    %110 = vmatprep.subr.bf16.mxu0 0
    %111 = vmatpush1.bf16.msra.mxu0 %v96
    %112 = vmatprep.subr.bf16.mxu0 0
    %113 = vmatpush1.bf16.msra.mxu0 %v97
    %114 = vmatprep.subr.bf16.mxu0 0
    %115 = vmatpush1.bf16.msra.mxu0 0
    %116 = vmatprep.subr.bf16.mxu0 0
    %117 = vmatpush1.bf16.msra.mxu0 0
    %118 = vmatprep.subr.bf16.mxu0 0
    %119 = vmatpush1.bf16.msra.mxu0 0
    %120 = vmatprep.subr.bf16.mxu0 0
    %121 = vmatpush1.bf16.msra.mxu0 0
    %122 = vmatprep.subr.bf16.mxu0 0
    %123 = vmatpush1.bf16.msra.mxu0 0
    %124 = vmatprep.subr.bf16.mxu0 0
    %125 = vmatpush1.bf16.msra.mxu0 0
    %126 = vmatprep.subr.bf16.mxu0 0
    %127 = vmatpush1.bf16.msra.mxu0 0
    %128 = vmatprep.subr.bf16.mxu0 0
    %129 = vmatpush1.bf16.msra.mxu0 0
    %130 = vmatprep.subr.bf16.mxu0 0
    %131 = vmatpush1.bf16.msra.mxu0 0
    %132 = vmatprep.subr.bf16.mxu0 0
    %133 = vmatpush1.bf16.msra.mxu0 0
    %134 = vmatprep.subr.bf16.mxu0 0
    %135 = vmatpush1.bf16.msra.mxu0 0
    %136 = vmatprep.subr.bf16.mxu0 0
    %137 = vmatpush1.bf16.msra.mxu0 0
    %138 = vmatprep.mubr.bf16.mxu0 0
    %139 = vmatmul.mubr.bf16.gmra.mrb[0].mxu0 %v104
    %v140 = vpop.f32.mrb[0].mxu0
    %v141 = vadd.f32 0.0, %v140
    %v142 = vpop.f32.mrb[0].mxu0
    %v143 = vpop.f32.mrb[0].mxu0
    %v144 = vadd.f32 0.0, %v143
    %v145 = vpop.f32.mrb[0].mxu0
    %146 = vdwg.mxu0
    %v147 = vmax.f32 %v141, 0.0
    %v148 = vmax.f32 %v144, 0.0
    %v149 = vld [vmem:[#allocation2] sm:$0xff]
    %v150 = vld [vmem:[#allocation2 + $0x8] sm:$0xff]
    %v151 = vpack.c.bf16 %v148, %v147
    %v152 = vld [vmem:[#allocation8] sm:$0xf]
    %v153 = vld [vmem:[#allocation8 + $0x4] sm:$0xf]
    %v154 = vld [vmem:[#allocation8 + $0x8] sm:$0xf]
    %v155 = vld [vmem:[#allocation8 + $0xc] sm:$0xf]
    %v156 = vld [vmem:[#allocation8 + $0x10] sm:$0xf]
    %v157 = vld [vmem:[#allocation8 + $0x14] sm:$0xf]
    %v158 = vld [vmem:[#allocation8 + $0x18] sm:$0xf]
    %v159 = vld [vmem:[#allocation8 + $0x1c] sm:$0xf]
    %v160 = vld [vmem:[#allocation8 + $0x20] sm:$0xf]
    %v161 = vld [vmem:[#allocation8 + $0x24] sm:$0xf]
    %v162 = vld [vmem:[#allocation8 + $0x28] sm:$0xf]
    %v163 = vld [vmem:[#allocation8 + $0x2c] sm:$0xf]
    %v164 = vld [vmem:[#allocation8 + $0x30] sm:$0xf]
    %v165 = vld [vmem:[#allocation8 + $0x34] sm:$0xf]
    %v166 = vld [vmem:[#allocation8 + $0x38] sm:$0xf]
    %v167 = vld [vmem:[#allocation8 + $0x3c] sm:$0xf]
    %v184 = vunpack.c.l.b16 %v152
    %v185 = vunpack.c.l.b16 %v153
    %v186 = vunpack.c.l.b16 %v154
    %v187 = vunpack.c.l.b16 %v155
    %v188 = vunpack.c.l.b16 %v156
    %v189 = vunpack.c.l.b16 %v157
    %v190 = vunpack.c.l.b16 %v158
    %v191 = vunpack.c.l.b16 %v159
    %v192 = vunpack.c.l.b16 %v160
    %v193 = vunpack.c.l.b16 %v161
    %v194 = vunpack.c.l.b16 %v162
    %v195 = vunpack.c.l.b16 %v163
    %v196 = vunpack.c.l.b16 %v164
    %v197 = vunpack.c.l.b16 %v165
    %v198 = vunpack.c.l.b16 %v166
    %v199 = vunpack.c.l.b16 %v167
    %v200 = vpack.c.b16 %v185, %v184
    %v201 = vpack.c.b16 %v187, %v186
    %v202 = vpack.c.b16 %v189, %v188
    %v203 = vpack.c.b16 %v191, %v190
    %v204 = vpack.c.b16 %v193, %v192
    %v205 = vpack.c.b16 %v195, %v194
    %v206 = vpack.c.b16 %v197, %v196
    %v207 = vpack.c.b16 %v199, %v198
    %216 = vmatprep.subr.bf16.mxu0 0
    %217 = vmatpush1.bf16.msra.mxu0 %v200
    %218 = vmatprep.subr.bf16.mxu0 0
    %219 = vmatpush1.bf16.msra.mxu0 %v201
    %220 = vmatprep.subr.bf16.mxu0 0
    %221 = vmatpush1.bf16.msra.mxu0 %v202
    %222 = vmatprep.subr.bf16.mxu0 0
    %223 = vmatpush1.bf16.msra.mxu0 %v203
    %224 = vmatprep.subr.bf16.mxu0 0
    %225 = vmatpush1.bf16.msra.mxu0 %v204
    %226 = vmatprep.subr.bf16.mxu0 0
    %227 = vmatpush1.bf16.msra.mxu0 %v205
    %228 = vmatprep.subr.bf16.mxu0 0
    %229 = vmatpush1.bf16.msra.mxu0 %v206
    %230 = vmatprep.subr.bf16.mxu0 0
    %231 = vmatpush1.bf16.msra.mxu0 %v207
    %232 = vmatprep.subr.bf16.mxu0 0
    %233 = vmatpush1.bf16.msra.mxu0 0
    %234 = vmatprep.subr.bf16.mxu0 0
    %235 = vmatpush1.bf16.msra.mxu0 0
    %236 = vmatprep.subr.bf16.mxu0 0
    %237 = vmatpush1.bf16.msra.mxu0 0
    %238 = vmatprep.subr.bf16.mxu0 0
    %239 = vmatpush1.bf16.msra.mxu0 0
    %240 = vmatprep.subr.bf16.mxu0 0
    %241 = vmatpush1.bf16.msra.mxu0 0
    %242 = vmatprep.subr.bf16.mxu0 0
    %243 = vmatpush1.bf16.msra.mxu0 0
    %244 = vmatprep.subr.bf16.mxu0 0
    %245 = vmatpush1.bf16.msra.mxu0 0
    %246 = vmatprep.subr.bf16.mxu0 0
    %247 = vmatpush1.bf16.msra.mxu0 0
    %248 = vmatprep.mubr.bf16.mxu0 0
    %249 = vmatmul.mubr.bf16.gmra.mrb[0].mxu0 %v151
    %v250 = vpop.f32.mrb[0].mxu0
    %v251 = vadd.f32 0.0, %v250
    %v252 = vpop.f32.mrb[0].mxu0
    %v253 = vpop.f32.mrb[0].mxu0
    %v254 = vadd.f32 0.0, %v253
    %v255 = vpop.f32.mrb[0].mxu0
    %256 = vdwg.mxu0
    %v257 = vadd.f32 %v149, %v251
    %v258 = vadd.f32 %v150, %v254
    %259 = vst [vmem:[#allocation2] sm:$0xff] %v257
    %260 = vst [vmem:[#allocation2 + $0x8] sm:$0xff] %v258
    // Predicated region
    $region30: #{tpu_custom_call.1} parent=1 // pred_check
      %p261 = pneg %p57
    $region31: #{tpu_custom_call.1} parent=1 // pred_check_branch
      %263 = sbr.rel (%p261) target = $region33
    $region32: #{tpu_custom_call.1} parent=1 // pred_region
      %v264 = vld [vmem:[#allocation2] sm:$0xff]
      %v265 = vld [vmem:[#allocation2 + $0x8] sm:$0xff]
      %266 = vst [vmem:[#allocation9] sm:$0xff] %v264
      %267 = vst [vmem:[#allocation9 + $0x8] sm:$0xff] %v265
    $region33: #{tpu_custom_call.1} parent=1 // pred_fallthru
      _
    // Predicated region
    $region34: #{tpu_custom_call.1} parent=1 // pred_check
      _
    $region35: #{tpu_custom_call.1} parent=1 // pred_check_branch
      %269 = sbr.rel (0) target = $region37
    $region36: #{tpu_custom_call.1} parent=1 // pred_region
      %s271 = ssub.s32 256, 256
      %272 = vsyncadd [#allocation5], %s271
      %s273 = sshll.u32 [#allocation9], 4
      %s274 = int_to_ptr.vmem [resolvable:$true] %s273
      %279 = dma.vmem_to_hbm [thread:$0]  %s274, 256, %s3, [#allocation5], 128, 128, 8
    $region37: #{tpu_custom_call.1} parent=1 // pred_fallthru
      _
    // Predicated region
    $region38: #{tpu_custom_call.1} parent=1 // pred_check
      _
    $region39: #{tpu_custom_call.1} parent=1 // pred_check_branch
      %281 = sbr.rel (0) target = $region41
    $region40: #{tpu_custom_call.1} parent=1 // pred_region
      %282 = dma.done [#allocation5], 256
    $region41: #{tpu_custom_call.1} parent=1 // pred_fallthru
      _
    %283 = vsyncpa [#allocation4], 1
    %284 = vsyncpa [#allocation7], 1
    %285 = vsyncpa [#allocation5], 1

</llo_original>
